<compile_context>
chip_gen: v7x
topology: tpu7x:2x2x1
jax: 0.10.0
libtpu: 0.0.40
codegen_flags: <defaults>
</compile_context>

<pallas_src>
import jax
import jax.numpy as jnp
from jax.experimental import pallas as pl
from jax.experimental.pallas import tpu as pltpu


def _round_up(n, m):
    return ((n + m - 1) // m) * m


def _mlp_softmax_kernel(xT_ref, w1_ref, b1_ref, w2_ref, b2_ref,
                        w3_ref, b3_ref, w4_ref, b4_ref, o_ref):
    # Lane-dense layout: batch lives on the 128-lane axis.  All operands f32;
    # every contraction runs on the MXU with f32 accumulation (no cast passes).
    xT = xT_ref[...]                                                     # (3, TB)

    # ---- layer1 + relu1 (MXU, K=3) ----
    h = jnp.dot(w1_ref[...], xT, preferred_element_type=jnp.float32)    # (64, TB)
    h = jnp.maximum(h + b1_ref[...], 0.0)

    # ---- layer2 + relu2 ----
    h = jnp.dot(w2_ref[...], h, preferred_element_type=jnp.float32)     # (32, TB)
    h = jnp.maximum(h + b2_ref[...], 0.0)

    # ---- layer3 + relu3 ----
    h = jnp.dot(w3_ref[...], h, preferred_element_type=jnp.float32)     # (16, TB)
    h = jnp.maximum(h + b3_ref[...], 0.0)

    # ---- layer4 ----
    logits = (jnp.dot(w4_ref[...], h, preferred_element_type=jnp.float32)
              + b4_ref[...])                                             # (9, TB)

    # ---- softmax over classes (sublane axis), numerically stable, exact ----
    m = jnp.max(logits, axis=0, keepdims=True)                           # (1, TB)
    e = jnp.exp(logits - m)                                              # EUP
    denom = jnp.sum(e, axis=0, keepdims=True)                            # (1, TB)
    o_ref[...] = (e * (1.0 / denom)).astype(o_ref.dtype)


def fish_classify_forward(x, params, *, block_b=2048):
    """x: [B, 3] float32.  Returns softmax probabilities [B, 9]."""
    w1, b1, w2, b2, w3, b3, w4, b4 = params
    B = x.shape[0]

    # Tile selection:
    #  * large tiles amortize the ~0.35us/step grid overhead,
    #  * but keep >= 2 blocks whenever B allows so v7x's 2 TensorCores both
    #    get work (harmless one extra step on v5e/v6e).
    tb = min(block_b, max(128, _round_up(pl.cdiv(B, 2), 128)))
    n_blocks = pl.cdiv(B, tb)

    # Lane-dense input layout: batch on lanes.  No zero-padding: the ragged
    # last block is handled by Pallas boundary blocks (stores are masked).
    xT = x.T.astype(jnp.float32)                                   # (3, B)

    # Biases as [out, 1] columns so they broadcast across lanes.
    b1c = b1.reshape(-1, 1).astype(jnp.float32)
    b2c = b2.reshape(-1, 1).astype(jnp.float32)
    b3c = b3.reshape(-1, 1).astype(jnp.float32)
    b4c = b4.reshape(-1, 1).astype(jnp.float32)

    w1f = w1.astype(jnp.float32)
    w2f = w2.astype(jnp.float32)
    w3f = w3.astype(jnp.float32)
    w4f = w4.astype(jnp.float32)

    def const_spec(shape):
        # tiny, grid-invariant operand: single full-extent block, fetched once.
        return pl.BlockSpec(shape, lambda i: (0,) * len(shape))

    args = (xT, w1f, b1c, w2f, b2c, w3f, b3c, w4f, b4c)
    flops = 2 * B * (3 * 64 + 64 * 32 + 32 * 16 + 16 * 9)
    bytes_accessed = (sum(int(a.size) * a.dtype.itemsize for a in args)
                      + 9 * B * 4)

    out_t = pl.pallas_call(
        _mlp_softmax_kernel,
        out_shape=jax.ShapeDtypeStruct((9, B), jnp.float32),
        grid=(n_blocks,),
        in_specs=[
            pl.BlockSpec((3, tb), lambda i: (0, i)),               # xT tile
            const_spec(w1f.shape), const_spec(b1c.shape),
            const_spec(w2f.shape), const_spec(b2c.shape),
            const_spec(w3f.shape), const_spec(b3c.shape),
            const_spec(w4f.shape), const_spec(b4c.shape),
        ],
        out_specs=pl.BlockSpec((9, tb), lambda i: (0, i)),
        compiler_params=pltpu.CompilerParams(
            dimension_semantics=("parallel",),
            vmem_limit_bytes=32 * 1024 * 1024,
        ),
        cost_estimate=pl.CostEstimate(
            flops=flops,
            transcendentals=9 * B,
            bytes_accessed=bytes_accessed,
        ),
    )(*args)

    # Back to PyTorch layout [B, 9].
    # TODO(synk): if the downstream consumer can take [9, B] (lane-dense),
    # drop this transpose to save ~72 B/elem of XLA-side HBM traffic.
    return out_t.T


def init_params(key):
    """Deterministic init with PyTorch nn.Linear shapes: W [out, in], b [out]."""
    dims = [(3, 64), (64, 32), (32, 16), (16, 9)]
    params = []
    for i, (fan_in, fan_out) in enumerate(dims):
        kw, kb = jax.random.split(jax.random.fold_in(key, i))
        bound = 1.0 / (fan_in ** 0.5)
        w = jax.random.uniform(kw, (fan_out, fan_in), jnp.float32, -bound, bound)
        b = jax.random.uniform(kb, (fan_out,), jnp.float32, -bound, bound)
        params += [w, b]
    return tuple(params)


def _reference(x, params):
    """Pure-JAX f32 reference matching the PyTorch forward."""
    w1, b1, w2, b2, w3, b3, w4, b4 = params
    h = jnp.maximum(x @ w1.T + b1, 0.0)
    h = jnp.maximum(h @ w2.T + b2, 0.0)
    h = jnp.maximum(h @ w3.T + b3, 0.0)
    logits = h @ w4.T + b4
    return jax.nn.softmax(logits, axis=-1)


if __name__ == "__main__":
    key = jax.random.PRNGKey(0)
    kx, kp = jax.random.split(key)

    # Small but non-trivial: with the auto-selected tile (256) this exercises
    # two grid blocks (v7x TC split) and the ragged-tail boundary-block path.
    B = 300
    x = jax.random.normal(kx, (B, 3), jnp.float32)
    params = init_params(kp)

    out = fish_classify_forward(x, params)
    out = jax.block_until_ready(out)

    ref = _reference(x, params)

    assert out.shape == (B, 9)
    # exact normalization -> rows of the softmax sum to ~1 at f32 precision
    row_sums = jnp.sum(out, axis=-1)
    assert bool(jnp.all(jnp.abs(row_sums - 1.0) < 1e-4)), "row sums off"
    # f32 operands everywhere -> near-bit parity with the f32 reference
    max_err = float(jnp.max(jnp.abs(out - ref)))
    assert max_err < 1e-3, f"max abs error vs f32 reference: {max_err}"

    print("KERNEL_OK")
</pallas_src>

<mosaic_0001>
module attributes {stable_mosaic.version = 11 : i64} {
  func.func @_mlp_softmax_kernel(%arg0: i32, %arg1: memref<3x256xf32, #tpu.memory_space<vmem>>, %arg2: memref<64x3xf32, #tpu.memory_space<vmem>>, %arg3: memref<64x1xf32, #tpu.memory_space<vmem>>, %arg4: memref<32x64xf32, #tpu.memory_space<vmem>>, %arg5: memref<32x1xf32, #tpu.memory_space<vmem>>, %arg6: memref<16x32xf32, #tpu.memory_space<vmem>>, %arg7: memref<16x1xf32, #tpu.memory_space<vmem>>, %arg8: memref<9x16xf32, #tpu.memory_space<vmem>>, %arg9: memref<9x1xf32, #tpu.memory_space<vmem>>, %arg10: memref<9x256xf32, #tpu.memory_space<vmem>>) attributes {dimension_semantics = [#tpu.dimension_semantics<parallel>], iteration_bounds = array<i64: 2>, scalar_prefetch = 0 : i64, scratch_operands = 0 : i64, tpu.core_type = #tpu.core_type<tc>, window_params = [{transform_indices = @transform_0, window_bounds = array<i64: 3, 256>}, {pipeline_mode = #tpu.pipeline_mode<synchronous>, transform_indices = @transform_1, window_bounds = array<i64: 64, 3>}, {pipeline_mode = #tpu.pipeline_mode<synchronous>, transform_indices = @transform_2, window_bounds = array<i64: 64, 1>}, {pipeline_mode = #tpu.pipeline_mode<synchronous>, transform_indices = @transform_3, window_bounds = array<i64: 32, 64>}, {pipeline_mode = #tpu.pipeline_mode<synchronous>, transform_indices = @transform_4, window_bounds = array<i64: 32, 1>}, {pipeline_mode = #tpu.pipeline_mode<synchronous>, transform_indices = @transform_5, window_bounds = array<i64: 16, 32>}, {pipeline_mode = #tpu.pipeline_mode<synchronous>, transform_indices = @transform_6, window_bounds = array<i64: 16, 1>}, {pipeline_mode = #tpu.pipeline_mode<synchronous>, transform_indices = @transform_7, window_bounds = array<i64: 9, 16>}, {pipeline_mode = #tpu.pipeline_mode<synchronous>, transform_indices = @transform_8, window_bounds = array<i64: 9, 1>}, {transform_indices = @transform_9, window_bounds = array<i64: 9, 256>}]} {
    %c0 = arith.constant 0 : index
    %c0_0 = arith.constant 0 : index
    %0 = vector.load %arg1[%c0, %c0_0] : memref<3x256xf32, #tpu.memory_space<vmem>>, vector<3x256xf32>
    %c0_1 = arith.constant 0 : index
    %c0_2 = arith.constant 0 : index
    %1 = vector.load %arg2[%c0_1, %c0_2] : memref<64x3xf32, #tpu.memory_space<vmem>>, vector<64x3xf32>
    %cst = arith.constant dense<0.000000e+00> : vector<64x256xf32>
    %2 = tpu.matmul %1, %0, %cst {dimension_numbers = #tpu.dot_dimension_numbers<[1], [0], [0], [1], [0, 0, 1, 1], [], []>} : vector<64x3xf32>, vector<3x256xf32>, vector<64x256xf32> -> vector<64x256xf32>
    %c0_3 = arith.constant 0 : index
    %c0_4 = arith.constant 0 : index
    %3 = vector.load %arg3[%c0_3, %c0_4] : memref<64x1xf32, #tpu.memory_space<vmem>>, vector<64x1xf32>
    %4 = vector.broadcast %3 : vector<64x1xf32> to vector<64x256xf32>
    %5 = arith.addf %2, %4 : vector<64x256xf32>
    %cst_5 = arith.constant 0.000000e+00 : f32
    %6 = vector.broadcast %cst_5 : f32 to vector<64x256xf32>
    %7 = arith.maximumf %5, %6 : vector<64x256xf32>
    %c0_6 = arith.constant 0 : index
    %c0_7 = arith.constant 0 : index
    %8 = vector.load %arg4[%c0_6, %c0_7] : memref<32x64xf32, #tpu.memory_space<vmem>>, vector<32x64xf32>
    %cst_8 = arith.constant dense<0.000000e+00> : vector<32x256xf32>
    %9 = tpu.matmul %8, %7, %cst_8 {dimension_numbers = #tpu.dot_dimension_numbers<[1], [0], [0], [1], [0, 0, 1, 1], [], []>} : vector<32x64xf32>, vector<64x256xf32>, vector<32x256xf32> -> vector<32x256xf32>
    %c0_9 = arith.constant 0 : index
    %c0_10 = arith.constant 0 : index
    %10 = vector.load %arg5[%c0_9, %c0_10] : memref<32x1xf32, #tpu.memory_space<vmem>>, vector<32x1xf32>
    %11 = vector.broadcast %10 : vector<32x1xf32> to vector<32x256xf32>
    %12 = arith.addf %9, %11 : vector<32x256xf32>
    %cst_11 = arith.constant 0.000000e+00 : f32
    %13 = vector.broadcast %cst_11 : f32 to vector<32x256xf32>
    %14 = arith.maximumf %12, %13 : vector<32x256xf32>
    %c0_12 = arith.constant 0 : index
    %c0_13 = arith.constant 0 : index
    %15 = vector.load %arg6[%c0_12, %c0_13] : memref<16x32xf32, #tpu.memory_space<vmem>>, vector<16x32xf32>
    %cst_14 = arith.constant dense<0.000000e+00> : vector<16x256xf32>
    %16 = tpu.matmul %15, %14, %cst_14 {dimension_numbers = #tpu.dot_dimension_numbers<[1], [0], [0], [1], [0, 0, 1, 1], [], []>} : vector<16x32xf32>, vector<32x256xf32>, vector<16x256xf32> -> vector<16x256xf32>
    %c0_15 = arith.constant 0 : index
    %c0_16 = arith.constant 0 : index
    %17 = vector.load %arg7[%c0_15, %c0_16] : memref<16x1xf32, #tpu.memory_space<vmem>>, vector<16x1xf32>
    %18 = vector.broadcast %17 : vector<16x1xf32> to vector<16x256xf32>
    %19 = arith.addf %16, %18 : vector<16x256xf32>
    %cst_17 = arith.constant 0.000000e+00 : f32
    %20 = vector.broadcast %cst_17 : f32 to vector<16x256xf32>
    %21 = arith.maximumf %19, %20 : vector<16x256xf32>
    %c0_18 = arith.constant 0 : index
    %c0_19 = arith.constant 0 : index
    %22 = vector.load %arg8[%c0_18, %c0_19] : memref<9x16xf32, #tpu.memory_space<vmem>>, vector<9x16xf32>
    %cst_20 = arith.constant dense<0.000000e+00> : vector<9x256xf32>
    %23 = tpu.matmul %22, %21, %cst_20 {dimension_numbers = #tpu.dot_dimension_numbers<[1], [0], [0], [1], [0, 0, 1, 1], [], []>} : vector<9x16xf32>, vector<16x256xf32>, vector<9x256xf32> -> vector<9x256xf32>
    %c0_21 = arith.constant 0 : index
    %c0_22 = arith.constant 0 : index
    %24 = vector.load %arg9[%c0_21, %c0_22] : memref<9x1xf32, #tpu.memory_space<vmem>>, vector<9x1xf32>
    %25 = vector.broadcast %24 : vector<9x1xf32> to vector<9x256xf32>
    %26 = arith.addf %23, %25 : vector<9x256xf32>
    %cst_23 = arith.constant dense<0xFF800000> : vector<256xf32>
    %27 = vector.multi_reduction <maximumf>, %26, %cst_23 [0] : vector<9x256xf32> to vector<256xf32>
    %28 = vector.shape_cast %27 : vector<256xf32> to vector<1x256xf32>
    %29 = vector.broadcast %28 : vector<1x256xf32> to vector<9x256xf32>
    %30 = arith.subf %26, %29 : vector<9x256xf32>
    %31 = math.exp %30 : vector<9x256xf32>
    %cst_24 = arith.constant dense<0.000000e+00> : vector<256xf32>
    %32 = vector.multi_reduction <add>, %31, %cst_24 [0] : vector<9x256xf32> to vector<256xf32>
    %33 = vector.shape_cast %32 : vector<256xf32> to vector<1x256xf32>
    %cst_25 = arith.constant 1.000000e+00 : f32
    %34 = vector.broadcast %cst_25 : f32 to vector<1x256xf32>
    %35 = arith.divf %34, %33 : vector<1x256xf32>
    %36 = vector.broadcast %35 : vector<1x256xf32> to vector<9x256xf32>
    %37 = arith.mulf %31, %36 : vector<9x256xf32>
    %c0_26 = arith.constant 0 : index
    %c0_27 = arith.constant 0 : index
    %38 = vector.load %arg10[%c0_26, %c0_27] : memref<9x256xf32, #tpu.memory_space<vmem>>, vector<9x256xf32>
    tpu.vector_store %arg10[%c0_26, %c0_27], %37 {strides = array<i32>} : memref<9x256xf32, #tpu.memory_space<vmem>>, vector<9x256xf32>,
    return
  }
  func.func @transform_0(%arg0: i32) -> (i32, i32) {
    %c0_i32 = arith.constant 0 : i32
    %c0_i32_0 = arith.constant 0 : i32
    return %c0_i32, %arg0 : i32, i32
  }
  func.func @transform_1(%arg0: i32) -> (i32, i32) {
    %c0_i32 = arith.constant 0 : i32
    %c0_i32_0 = arith.constant 0 : i32
    %c0_i32_1 = arith.constant 0 : i32
    return %c0_i32, %c0_i32_0 : i32, i32
  }
  func.func @transform_2(%arg0: i32) -> (i32, i32) {
    %c0_i32 = arith.constant 0 : i32
    %c0_i32_0 = arith.constant 0 : i32
    %c0_i32_1 = arith.constant 0 : i32
    return %c0_i32, %c0_i32_0 : i32, i32
  }
  func.func @transform_3(%arg0: i32) -> (i32, i32) {
    %c0_i32 = arith.constant 0 : i32
    %c0_i32_0 = arith.constant 0 : i32
    %c0_i32_1 = arith.constant 0 : i32
    return %c0_i32, %c0_i32_0 : i32, i32
  }
  func.func @transform_4(%arg0: i32) -> (i32, i32) {
    %c0_i32 = arith.constant 0 : i32
    %c0_i32_0 = arith.constant 0 : i32
    %c0_i32_1 = arith.constant 0 : i32
    return %c0_i32, %c0_i32_0 : i32, i32
  }
  func.func @transform_5(%arg0: i32) -> (i32, i32) {
    %c0_i32 = arith.constant 0 : i32
    %c0_i32_0 = arith.constant 0 : i32
    %c0_i32_1 = arith.constant 0 : i32
    return %c0_i32, %c0_i32_0 : i32, i32
  }
  func.func @transform_6(%arg0: i32) -> (i32, i32) {
    %c0_i32 = arith.constant 0 : i32
    %c0_i32_0 = arith.constant 0 : i32
    %c0_i32_1 = arith.constant 0 : i32
    return %c0_i32, %c0_i32_0 : i32, i32
  }
  func.func @transform_7(%arg0: i32) -> (i32, i32) {
    %c0_i32 = arith.constant 0 : i32
    %c0_i32_0 = arith.constant 0 : i32
    %c0_i32_1 = arith.constant 0 : i32
    return %c0_i32, %c0_i32_0 : i32, i32
  }
  func.func @transform_8(%arg0: i32) -> (i32, i32) {
    %c0_i32 = arith.constant 0 : i32
    %c0_i32_0 = arith.constant 0 : i32
    %c0_i32_1 = arith.constant 0 : i32
    return %c0_i32, %c0_i32_0 : i32, i32
  }
  func.func @transform_9(%arg0: i32) -> (i32, i32) {
    %c0_i32 = arith.constant 0 : i32
    %c0_i32_0 = arith.constant 0 : i32
    return %c0_i32, %arg0 : i32, i32
  }
}

</mosaic_0001>

<llo_original>
// kernel: tpu_custom_call.1
$region0: #{tpu_custom_call.1}
  #allocation0 [shape = 'u32[]', space=smem, size = 0x4, offset = 0x4, fixed_abs, tag = 'smem constant byte address 0x4 - core index']
  #allocation1 [shape = 'u32[144,128]{1,0:T(1,128)}', space=vmem, size = 0x12000, scoped, tag = 'internal scratch']
  %s0 = inlined_call_operand.vmem [shape: f32[3,300], index: 0, kind: input, shape index: {}]
  %s1 = inlined_call_operand.vmem [shape: f32[64,3], index: 1, kind: input, shape index: {}]
  %s2 = inlined_call_operand.vmem [shape: f32[64,1], index: 2, kind: input, shape index: {}]
  %s3 = inlined_call_operand.vmem [shape: f32[32,64], index: 3, kind: input, shape index: {}]
  %s4 = inlined_call_operand.vmem [shape: f32[32,1], index: 4, kind: input, shape index: {}]
  %s5 = inlined_call_operand.vmem [shape: f32[16,32], index: 5, kind: input, shape index: {}]
  %s6 = inlined_call_operand.vmem [shape: f32[16,1], index: 6, kind: input, shape index: {}]
  %s7 = inlined_call_operand.vmem [shape: f32[9,16], index: 7, kind: input, shape index: {}]
  %s8 = inlined_call_operand.vmem [shape: f32[9,1], index: 8, kind: input, shape index: {}]
  %s9 = inlined_call_operand.hbm [shape: f32[9,300], index: 9, kind: output, shape index: {}]
  %s10 = sld [smem:[#allocation0]]
  $region69: #{tpu_custom_call.1} parent=0
    _
  %s12 = ssub.s32 1, %s10
  %s13 = scalar_select 0, %s12, %s10
  $region1: #{tpu_custom_call.1} parent=0
    #allocation2 [shape = 'u8[32768]{0}', space=vmem, size = 0x8000, scoped, tag = 'output window, operand 0']
    #allocation3 [shape = 's32[2]{0}', space=sflag, size = 0x8, scoped, tag = 'scoped memory for tpu_custom_call.1']
    %14 = vsyncpa [#allocation3], 0
    %s15 = scalar_lea.sflag [#allocation3], 1
    %16 = vsyncpa %s15, 0
    loop: start=0, step=1, limit=4
    $region2: #{tpu_custom_call.1} parent=1 // loop_pre_header
      _
    $region3: #{tpu_custom_call.1} parent=1 // loop_header
      %s18 = sphi 0, %s22
      %p19 = scmp.ge.s32.totalorder %s18, 4
      %s28 = sphi 0, %s30
      %s31 = sphi 0, %s28
      %s32 = sphi 0, %s31
      %s48 = sphi 0, %s32
      %s52 = sphi 0, %s52
      %s54 = sphi 0, %s52
      %s55 = sphi 0, %s54
      %s69 = sphi 0, %s55
      %s73 = sphi 0, %s73
      %s75 = sphi 0, %s73
      %s76 = sphi 0, %s75
      %s90 = sphi 0, %s76
      %s94 = sphi 0, %s94
      %s96 = sphi 0, %s94
      %s97 = sphi 0, %s96
      %s111 = sphi 0, %s97
      %s115 = sphi 0, %s115
      %s117 = sphi 0, %s115
      %s118 = sphi 0, %s117
      %s132 = sphi 0, %s118
      %s136 = sphi 0, %s136
      %s138 = sphi 0, %s136
      %s139 = sphi 0, %s138
      %s153 = sphi 0, %s139
      %s157 = sphi 0, %s157
      %s159 = sphi 0, %s157
      %s160 = sphi 0, %s159
      %s174 = sphi 0, %s160
      %s178 = sphi 0, %s178
      %s180 = sphi 0, %s178
      %s181 = sphi 0, %s180
      %s195 = sphi 0, %s181
      %s199 = sphi 0, %s199
      %s201 = sphi 0, %s199
      %s202 = sphi 0, %s201
      %s216 = sphi 0, %s202
      %s222 = sphi 0, %s224
      %s225 = sphi 0, %s222
      %s226 = sphi 0, %s225
      %s242 = sphi 0, %s226
    $region4: #{tpu_custom_call.1} parent=1 // loop_header_branch
      %21 = sbr.rel (%p19) target = $region8
    $region5: #{tpu_custom_call.1} parent=1 // loop_body
      %s23 = ssub.s32 %s18, 1
      %s24 = ssub.s32 %s18, 2
      %s25 = sadd.s32 %s18, 1
      %s26 = ssub.s32 %s18, %s25
      %p27 = scmp.eq.s32.totalorder %s26, 0
      %s29 = sadd.s32 %s28, 1
      %s30 = scalar_select %p27, %s28, %s29
      %p33 = pneg %p27
      %p34 = scmp.eq.s32.totalorder %s18, 1
      %p35 = por %p33, %p34
      %p36 = scmp.ne.s32.totalorder %s28, %s31
      %p37 = scmp.eq.s32.totalorder %s18, 0
      %p38 = por %p36, %p37
      %p39 = scmp.ne.s32.totalorder %s28, %s31
      %p40 = scmp.eq.s32.totalorder %s23, 1
      %p41 = por %p39, %p40
      %p42 = scmp.ne.s32.totalorder %s31, %s32
      %p43 = scmp.eq.s32.totalorder %s23, 0
      %p44 = por %p42, %p43
      %p45 = scmp.ne.s32.totalorder %s31, %s32
      %p46 = scmp.eq.s32.totalorder %s24, 1
      %p47 = por %p45, %p46
      %p49 = scmp.ne.s32.totalorder %s32, %s48
      %p50 = scmp.eq.s32.totalorder %s24, 0
      %p51 = por %p49, %p50
      %s53 = sadd.s32 %s52, 1
      %p56 = scmp.eq.s32.totalorder %s18, 1
      %p57 = scmp.ne.s32.totalorder %s52, %s54
      %p58 = scmp.eq.s32.totalorder %s18, 0
      %p59 = por %p57, %p58
      %p60 = scmp.ne.s32.totalorder %s52, %s54
      %p61 = scmp.eq.s32.totalorder %s23, 1
      %p62 = por %p60, %p61
      %p63 = scmp.ne.s32.totalorder %s54, %s55
      %p64 = scmp.eq.s32.totalorder %s23, 0
      %p65 = por %p63, %p64
      %p66 = scmp.ne.s32.totalorder %s54, %s55
      %p67 = scmp.eq.s32.totalorder %s24, 1
      %p68 = por %p66, %p67
      %p70 = scmp.ne.s32.totalorder %s55, %s69
      %p71 = scmp.eq.s32.totalorder %s24, 0
      %p72 = por %p70, %p71
      %s74 = sadd.s32 %s73, 1
      %p77 = scmp.eq.s32.totalorder %s18, 1
      %p78 = scmp.ne.s32.totalorder %s73, %s75
      %p79 = scmp.eq.s32.totalorder %s18, 0
      %p80 = por %p78, %p79
      %p81 = scmp.ne.s32.totalorder %s73, %s75
      %p82 = scmp.eq.s32.totalorder %s23, 1
      %p83 = por %p81, %p82
      %p84 = scmp.ne.s32.totalorder %s75, %s76
      %p85 = scmp.eq.s32.totalorder %s23, 0
      %p86 = por %p84, %p85
      %p87 = scmp.ne.s32.totalorder %s75, %s76
      %p88 = scmp.eq.s32.totalorder %s24, 1
      %p89 = por %p87, %p88
      %p91 = scmp.ne.s32.totalorder %s76, %s90
      %p92 = scmp.eq.s32.totalorder %s24, 0
      %p93 = por %p91, %p92
      %s95 = sadd.s32 %s94, 1
      %p98 = scmp.eq.s32.totalorder %s18, 1
      %p99 = scmp.ne.s32.totalorder %s94, %s96
      %p100 = scmp.eq.s32.totalorder %s18, 0
      %p101 = por %p99, %p100
      %p102 = scmp.ne.s32.totalorder %s94, %s96
      %p103 = scmp.eq.s32.totalorder %s23, 1
      %p104 = por %p102, %p103
      %p105 = scmp.ne.s32.totalorder %s96, %s97
      %p106 = scmp.eq.s32.totalorder %s23, 0
      %p107 = por %p105, %p106
      %p108 = scmp.ne.s32.totalorder %s96, %s97
      %p109 = scmp.eq.s32.totalorder %s24, 1
      %p110 = por %p108, %p109
      %p112 = scmp.ne.s32.totalorder %s97, %s111
      %p113 = scmp.eq.s32.totalorder %s24, 0
      %p114 = por %p112, %p113
      %s116 = sadd.s32 %s115, 1
      %p119 = scmp.eq.s32.totalorder %s18, 1
      %p120 = scmp.ne.s32.totalorder %s115, %s117
      %p121 = scmp.eq.s32.totalorder %s18, 0
      %p122 = por %p120, %p121
      %p123 = scmp.ne.s32.totalorder %s115, %s117
      %p124 = scmp.eq.s32.totalorder %s23, 1
      %p125 = por %p123, %p124
      %p126 = scmp.ne.s32.totalorder %s117, %s118
      %p127 = scmp.eq.s32.totalorder %s23, 0
      %p128 = por %p126, %p127
      %p129 = scmp.ne.s32.totalorder %s117, %s118
      %p130 = scmp.eq.s32.totalorder %s24, 1
      %p131 = por %p129, %p130
      %p133 = scmp.ne.s32.totalorder %s118, %s132
      %p134 = scmp.eq.s32.totalorder %s24, 0
      %p135 = por %p133, %p134
      %s137 = sadd.s32 %s136, 1
      %p140 = scmp.eq.s32.totalorder %s18, 1
      %p141 = scmp.ne.s32.totalorder %s136, %s138
      %p142 = scmp.eq.s32.totalorder %s18, 0
      %p143 = por %p141, %p142
      %p144 = scmp.ne.s32.totalorder %s136, %s138
      %p145 = scmp.eq.s32.totalorder %s23, 1
      %p146 = por %p144, %p145
      %p147 = scmp.ne.s32.totalorder %s138, %s139
      %p148 = scmp.eq.s32.totalorder %s23, 0
      %p149 = por %p147, %p148
      %p150 = scmp.ne.s32.totalorder %s138, %s139
      %p151 = scmp.eq.s32.totalorder %s24, 1
      %p152 = por %p150, %p151
      %p154 = scmp.ne.s32.totalorder %s139, %s153
      %p155 = scmp.eq.s32.totalorder %s24, 0
      %p156 = por %p154, %p155
      %s158 = sadd.s32 %s157, 1
      %p161 = scmp.eq.s32.totalorder %s18, 1
      %p162 = scmp.ne.s32.totalorder %s157, %s159
      %p163 = scmp.eq.s32.totalorder %s18, 0
      %p164 = por %p162, %p163
      %p165 = scmp.ne.s32.totalorder %s157, %s159
      %p166 = scmp.eq.s32.totalorder %s23, 1
      %p167 = por %p165, %p166
      %p168 = scmp.ne.s32.totalorder %s159, %s160
      %p169 = scmp.eq.s32.totalorder %s23, 0
      %p170 = por %p168, %p169
      %p171 = scmp.ne.s32.totalorder %s159, %s160
      %p172 = scmp.eq.s32.totalorder %s24, 1
      %p173 = por %p171, %p172
      %p175 = scmp.ne.s32.totalorder %s160, %s174
      %p176 = scmp.eq.s32.totalorder %s24, 0
      %p177 = por %p175, %p176
      %s179 = sadd.s32 %s178, 1
      %p182 = scmp.eq.s32.totalorder %s18, 1
      %p183 = scmp.ne.s32.totalorder %s178, %s180
      %p184 = scmp.eq.s32.totalorder %s18, 0
      %p185 = por %p183, %p184
      %p186 = scmp.ne.s32.totalorder %s178, %s180
      %p187 = scmp.eq.s32.totalorder %s23, 1
      %p188 = por %p186, %p187
      %p189 = scmp.ne.s32.totalorder %s180, %s181
      %p190 = scmp.eq.s32.totalorder %s23, 0
      %p191 = por %p189, %p190
      %p192 = scmp.ne.s32.totalorder %s180, %s181
      %p193 = scmp.eq.s32.totalorder %s24, 1
      %p194 = por %p192, %p193
      %p196 = scmp.ne.s32.totalorder %s181, %s195
      %p197 = scmp.eq.s32.totalorder %s24, 0
      %p198 = por %p196, %p197
      %s200 = sadd.s32 %s199, 1
      %p203 = scmp.eq.s32.totalorder %s18, 1
      %p204 = scmp.ne.s32.totalorder %s199, %s201
      %p205 = scmp.eq.s32.totalorder %s18, 0
      %p206 = por %p204, %p205
      %p207 = scmp.ne.s32.totalorder %s199, %s201
      %p208 = scmp.eq.s32.totalorder %s23, 1
      %p209 = por %p207, %p208
      %p210 = scmp.ne.s32.totalorder %s201, %s202
      %p211 = scmp.eq.s32.totalorder %s23, 0
      %p212 = por %p210, %p211
      %p213 = scmp.ne.s32.totalorder %s201, %s202
      %p214 = scmp.eq.s32.totalorder %s24, 1
      %p215 = por %p213, %p214
      %p217 = scmp.ne.s32.totalorder %s202, %s216
      %p218 = scmp.eq.s32.totalorder %s24, 0
      %p219 = por %p217, %p218
      %s220 = ssub.s32 %s18, %s25
      %p221 = scmp.eq.s32.totalorder %s220, 0
      %s223 = sadd.s32 %s222, 1
      %s224 = scalar_select %p221, %s222, %s223
      %p227 = pneg %p221
      %p228 = scmp.eq.s32.totalorder %s18, 1
      %p229 = por %p227, %p228
      %p230 = scmp.ne.s32.totalorder %s222, %s225
      %p231 = scmp.eq.s32.totalorder %s18, 0
      %p232 = por %p230, %p231
      %p233 = scmp.ne.s32.totalorder %s222, %s225
      %p234 = scmp.eq.s32.totalorder %s23, 1
      %p235 = por %p233, %p234
      %p236 = scmp.ne.s32.totalorder %s225, %s226
      %p237 = scmp.eq.s32.totalorder %s23, 0
      %p238 = por %p236, %p237
      %p239 = scmp.ne.s32.totalorder %s225, %s226
      %p240 = scmp.eq.s32.totalorder %s24, 1
      %p241 = por %p239, %p240
      %p243 = scmp.ne.s32.totalorder %s226, %s242
      %p244 = scmp.eq.s32.totalorder %s24, 0
      %p245 = por %p243, %p244
      %p246 = scmp.le.s32.totalorder 1, %s18
      %p247 = scmp.lt.s32.totalorder %s18, 3
      %p248 = pnand %p246, %p247
      %p249 = pneg %p248
      // Predicated region
      $region9: #{tpu_custom_call.1} parent=5 // pred_check
        _
      $region10: #{tpu_custom_call.1} parent=5 // pred_check_branch
        %251 = sbr.rel (%p248) target = $region12
      $region11: #{tpu_custom_call.1} parent=5 // pred_region
        %s252 = ssub.s32 %s18, 1
        // Predicated region
        $region13: #{tpu_custom_call.1} parent=11 // pred_check
          %p253 = pneg %p65
        $region14: #{tpu_custom_call.1} parent=11 // pred_check_branch
          %255 = sbr.rel (%p253) target = $region16
        $region15: #{tpu_custom_call.1} parent=11 // pred_region
          _
        $region16: #{tpu_custom_call.1} parent=11 // pred_fallthru
          _
        // Predicated region
        $region17: #{tpu_custom_call.1} parent=11 // pred_check
          %p256 = pneg %p86
        $region18: #{tpu_custom_call.1} parent=11 // pred_check_branch
          %258 = sbr.rel (%p256) target = $region20
        $region19: #{tpu_custom_call.1} parent=11 // pred_region
          _
        $region20: #{tpu_custom_call.1} parent=11 // pred_fallthru
          _
        // Predicated region
        $region21: #{tpu_custom_call.1} parent=11 // pred_check
          %p259 = pneg %p107
        $region22: #{tpu_custom_call.1} parent=11 // pred_check_branch
          %261 = sbr.rel (%p259) target = $region24
        $region23: #{tpu_custom_call.1} parent=11 // pred_region
          _
        $region24: #{tpu_custom_call.1} parent=11 // pred_fallthru
          _
        // Predicated region
        $region25: #{tpu_custom_call.1} parent=11 // pred_check
          %p262 = pneg %p128
        $region26: #{tpu_custom_call.1} parent=11 // pred_check_branch
          %264 = sbr.rel (%p262) target = $region28
        $region27: #{tpu_custom_call.1} parent=11 // pred_region
          _
        $region28: #{tpu_custom_call.1} parent=11 // pred_fallthru
          _
        // Predicated region
        $region29: #{tpu_custom_call.1} parent=11 // pred_check
          %p265 = pneg %p149
        $region30: #{tpu_custom_call.1} parent=11 // pred_check_branch
          %267 = sbr.rel (%p265) target = $region32
        $region31: #{tpu_custom_call.1} parent=11 // pred_region
          _
        $region32: #{tpu_custom_call.1} parent=11 // pred_fallthru
          _
        // Predicated region
        $region33: #{tpu_custom_call.1} parent=11 // pred_check
          %p268 = pneg %p170
        $region34: #{tpu_custom_call.1} parent=11 // pred_check_branch
          %270 = sbr.rel (%p268) target = $region36
        $region35: #{tpu_custom_call.1} parent=11 // pred_region
          _
        $region36: #{tpu_custom_call.1} parent=11 // pred_fallthru
          _
        // Predicated region
        $region37: #{tpu_custom_call.1} parent=11 // pred_check
          %p271 = pneg %p191
        $region38: #{tpu_custom_call.1} parent=11 // pred_check_branch
          %273 = sbr.rel (%p271) target = $region40
        $region39: #{tpu_custom_call.1} parent=11 // pred_region
          _
        $region40: #{tpu_custom_call.1} parent=11 // pred_fallthru
          _
        // Predicated region
        $region41: #{tpu_custom_call.1} parent=11 // pred_check
          %p274 = pneg %p212
        $region42: #{tpu_custom_call.1} parent=11 // pred_check_branch
          %276 = sbr.rel (%p274) target = $region44
        $region43: #{tpu_custom_call.1} parent=11 // pred_region
          _
        $region44: #{tpu_custom_call.1} parent=11 // pred_fallthru
          _
      $region12: #{tpu_custom_call.1} parent=5 // pred_fallthru
        _
      %p277 = scmp.lt.s32.totalorder %s18, 2
      // Predicated region
      $region45: #{tpu_custom_call.1} parent=5 // pred_check
        %p278 = pneg %p277
      $region46: #{tpu_custom_call.1} parent=5 // pred_check_branch
        %280 = sbr.rel (%p278) target = $region48
      $region47: #{tpu_custom_call.1} parent=5 // pred_region
        // Predicated region
        $region49: #{tpu_custom_call.1} parent=47 // pred_check
          %p281 = pneg %p38
        $region50: #{tpu_custom_call.1} parent=47 // pred_check_branch
          %283 = sbr.rel (%p281) target = $region52
        $region51: #{tpu_custom_call.1} parent=47 // pred_region
          %s284 = smul.u32 2, %s18
          %s285 = ssub.s32 3, %s284
          %p286 = scmp.lt.s32.totalorder %s285, 2
          %s287 = scalar_select %p286, %s285, 2
          %s288 = smul.u32 64, %s287
          %p289 = scmp.lt.s32.totalorder %s284, 2
          %s290 = scalar_select %p289, %s284, 2
          %s291 = smul.addr %s290, 4
          %s292 = scalar_lea.vmem %s0, %s291
          %s293 = smul.u32 2, %s18
          %s294 = ssub.s32 3, %s293
          %p295 = scmp.lt.s32.totalorder %s294, 2
          %s296 = scalar_select %p295, %s294, 2
          %s297 = smul.u32 64, %s296
        $region52: #{tpu_custom_call.1} parent=47 // pred_fallthru
          _
      $region48: #{tpu_custom_call.1} parent=5 // pred_fallthru
        _
      %p298 = scmp.le.s32.totalorder 1, %s18
      %p299 = scmp.lt.s32.totalorder %s18, 3
      %p300 = pnand %p298, %p299
      %p301 = pneg %p300
      // Predicated region
      $region53: #{tpu_custom_call.1} parent=5 // pred_check
        _
      $region54: #{tpu_custom_call.1} parent=5 // pred_check_branch
        %303 = sbr.rel (%p300) target = $region56
      $region55: #{tpu_custom_call.1} parent=5 // pred_region
        %s304 = ssub.s32 %s18, 1
        %s305 = smul.u32 2, %s23
        %s306 = ssub.s32 3, %s305
        %p307 = scmp.lt.s32.totalorder %s306, 2
        %s308 = scalar_select %p307, %s306, 2
        %s309 = smul.u32 64, %s308
        %p310 = scmp.lt.s32.totalorder %s305, 2
        %s311 = scalar_select %p310, %s305, 2
        %s312 = smul.addr %s311, 4
        %s313 = scalar_lea.vmem %s0, %s312
        %p314 = pneg %p44
        %p315 = pneg %p41
        %p316 = pneg %p65
        %p317 = pneg %p62
        %p318 = pneg %p86
        %p319 = pneg %p83
        %p320 = pneg %p107
        %p321 = pneg %p104
        %p322 = pneg %p128
        %p323 = pneg %p125
        %p324 = pneg %p149
        %p325 = pneg %p146
        %p326 = pneg %p170
        %p327 = pneg %p167
        %p328 = pneg %p191
        %p329 = pneg %p188
        %p330 = pneg %p212
        %p331 = pneg %p209
        %p332 = pneg %p238
        %p333 = pneg %p235
        %s334 = sand.u32 %s225, 1
        %s335 = scalar_lea.sflag [#allocation3], %s334
        %s336 = sand.u32 %s225, 1
        %s337 = smul.addr %s336, 32
        %s338 = scalar_lea.vmem [#allocation2], %s337
        %s339 = smul.u32 2, %s23
        %s340 = ssub.s32 3, %s339
        %p341 = scmp.lt.s32.totalorder %s340, 2
        %s342 = scalar_select %p341, %s340, 2
        %s343 = smul.u32 64, %s342
        %p344 = scmp.lt.s32.totalorder %s339, 2
        %s345 = scalar_select %p344, %s339, 2
        %s346 = smul.addr %s345, 4
        %s347 = scalar_lea.vmem %s0, %s346
        %s348 = smul.u32 2, %s23
        %s349 = ssub.s32 3, %s348
        %p350 = scmp.lt.s32.totalorder %s349, 2
        %s351 = scalar_select %p350, %s349, 2
        %s352 = smul.u32 64, %s351
        %s353 = smul.u32 2, %s23
        %s354 = ssub.s32 3, %s353
        %p355 = scmp.lt.s32.totalorder %s354, 2
        %s356 = scalar_select %p355, %s354, 2
        %s357 = smul.u32 256, %s356
        %v358 = vld [vmem:[%s347] sm:$0x77]
        %v359 = vld [vmem:[%s1] sm:$0xff]
        %v360 = vld [vmem:[%s1 + $0x8] sm:$0xff]
        %v361 = vld [vmem:[%s1 + $0x10] sm:$0xff]
        %v362 = vld [vmem:[%s1 + $0x18] sm:$0xff]
        %v363 = vld [vmem:[%s1 + $0x20] sm:$0xff]
        %v364 = vld [vmem:[%s1 + $0x28] sm:$0xff]
        %v365 = vld [vmem:[%s1 + $0x30] sm:$0xff]
        %v366 = vld [vmem:[%s1 + $0x38] sm:$0xff]
        %v367 = vld [vmem:[%s2] sm:$0xff]
        %v368 = vld [vmem:[%s2 + $0x8] sm:$0xff]
        %v369 = vld [vmem:[%s2 + $0x10] sm:$0xff]
        %v370 = vld [vmem:[%s2 + $0x18] sm:$0xff]
        %v371 = vld [vmem:[%s2 + $0x20] sm:$0xff]
        %v372 = vld [vmem:[%s2 + $0x28] sm:$0xff]
        %v373 = vld [vmem:[%s2 + $0x30] sm:$0xff]
        %v374 = vld [vmem:[%s2 + $0x38] sm:$0xff]
        %376 = vset.pattern.permute.xlu0 0
        %377 = vperm.xlu0 %376, %v367
        %v378 = vpop.permute.xlu0 %377
        %381 = vset.pattern.permute.xlu0 0
        %382 = vperm.xlu0 %381, %v368
        %v383 = vpop.permute.xlu0 %382
        %386 = vset.pattern.permute.xlu0 0
        %387 = vperm.xlu0 %386, %v369
        %v388 = vpop.permute.xlu0 %387
        %391 = vset.pattern.permute.xlu0 0
        %392 = vperm.xlu0 %391, %v370
        %v393 = vpop.permute.xlu0 %392
        %396 = vset.pattern.permute.xlu0 0
        %397 = vperm.xlu0 %396, %v371
        %v398 = vpop.permute.xlu0 %397
        %401 = vset.pattern.permute.xlu0 0
        %402 = vperm.xlu0 %401, %v372
        %v403 = vpop.permute.xlu0 %402
        %406 = vset.pattern.permute.xlu0 0
        %407 = vperm.xlu0 %406, %v373
        %v408 = vpop.permute.xlu0 %407
        %411 = vset.pattern.permute.xlu0 0
        %412 = vperm.xlu0 %411, %v374
        %v413 = vpop.permute.xlu0 %412
        %v416 = vcombine.high %v358, %v358
        %vm417 = vcmask 23552
        %v419 = vsel %vm417, %v359, 0
        %v422 = vsel %vm417, %v360, 0
        %v425 = vsel %vm417, %v361, 0
        %v428 = vsel %vm417, %v362, 0
        %v431 = vsel %vm417, %v363, 0
        %v434 = vsel %vm417, %v364, 0
        %v437 = vsel %vm417, %v365, 0
        %v440 = vsel %vm417, %v366, 0
        %vm442 = vcmask 1042432
        %v443 = vsel %vm442, %v358, 0
        %v445 = vsel %vm442, %v416, 0
        %447 = vmatprep.subr.mxu0 %v445
        %448 = vmatpush1.msra.mxu0 %v443
        %449 = vmatprep.subr.mxu0 0.0
        %450 = vmatpush1.msra.mxu0 0.0
        %451 = vmatprep.subr.mxu0 0.0
        %452 = vmatpush1.msra.mxu0 0.0
        %453 = vmatprep.subr.mxu0 0.0
        %454 = vmatpush1.msra.mxu0 0.0
        %455 = vmatprep.subr.mxu0 0.0
        %456 = vmatpush1.msra.mxu0 0.0
        %457 = vmatprep.subr.mxu0 0.0
        %458 = vmatpush1.msra.mxu0 0.0
        %459 = vmatprep.subr.mxu0 0.0
        %460 = vmatpush1.msra.mxu0 0.0
        %461 = vmatprep.subr.mxu0 0.0
        %462 = vmatpush1.msra.mxu0 0.0
        %463 = vmatprep.subr.mxu0 0.0
        %464 = vmatpush1.msra.mxu0 0.0
        %465 = vmatprep.subr.mxu0 0.0
        %466 = vmatpush1.msra.mxu0 0.0
        %467 = vmatprep.subr.mxu0 0.0
        %468 = vmatpush1.msra.mxu0 0.0
        %469 = vmatprep.subr.mxu0 0.0
        %470 = vmatpush1.msra.mxu0 0.0
        %471 = vmatprep.subr.mxu0 0.0
        %472 = vmatpush1.msra.mxu0 0.0
        %473 = vmatprep.subr.mxu0 0.0
        %474 = vmatpush1.msra.mxu0 0.0
        %475 = vmatprep.subr.mxu0 0.0
        %476 = vmatpush1.msra.mxu0 0.0
        %477 = vmatprep.subr.mxu0 0.0
        %478 = vmatpush1.msra.mxu0 0.0
        %479 = vmatprep.subr.mxu0 0.0
        %480 = vmatpush1.msra.mxu0 0.0
        %481 = vmatprep.subr.mxu0 0.0
        %482 = vmatpush1.msra.mxu0 0.0
        %483 = vmatprep.subr.mxu0 0.0
        %484 = vmatpush1.msra.mxu0 0.0
        %485 = vmatprep.subr.mxu0 0.0
        %486 = vmatpush1.msra.mxu0 0.0
        %487 = vmatprep.subr.mxu0 0.0
        %488 = vmatpush1.msra.mxu0 0.0
        %489 = vmatprep.subr.mxu0 0.0
        %490 = vmatpush1.msra.mxu0 0.0
        %491 = vmatprep.subr.mxu0 0.0
        %492 = vmatpush1.msra.mxu0 0.0
        %493 = vmatprep.subr.mxu0 0.0
        %494 = vmatpush1.msra.mxu0 0.0
        %495 = vmatprep.subr.mxu0 0.0
        %496 = vmatpush1.msra.mxu0 0.0
        %497 = vmatprep.subr.mxu0 0.0
        %498 = vmatpush1.msra.mxu0 0.0
        %499 = vmatprep.subr.mxu0 0.0
        %500 = vmatpush1.msra.mxu0 0.0
        %501 = vmatprep.subr.mxu0 0.0
        %502 = vmatpush1.msra.mxu0 0.0
        %503 = vmatprep.subr.mxu0 0.0
        %504 = vmatpush1.msra.mxu0 0.0
        %505 = vmatprep.subr.mxu0 0.0
        %506 = vmatpush1.msra.mxu0 0.0
        %507 = vmatprep.subr.mxu0 0.0
        %508 = vmatpush1.msra.mxu0 0.0
        %509 = vmatprep.subr.mxu0 0.0
        %510 = vmatpush1.msra.mxu0 0.0
        %511 = vmatprep.mubr.f32.mxu0 0.0
        %512 = vmatmul.mubr.f32.gmra.mrb[0].mxu0 %v419
        %v513 = vpop.f32.mrb[0].mxu0
        %v514 = vadd.f32 %v378, %v513
        %v515 = vpop.f32.mrb[0].mxu0
        %v516 = vadd.f32 %v378, %v515
        %517 = vmatprep.mubr.f32.mxu0 0.0
        %518 = vmatmul.mubr.f32.gmra.mrb[0].mxu0 %v422
        %v519 = vpop.f32.mrb[0].mxu0
        %v520 = vadd.f32 %v383, %v519
        %v521 = vpop.f32.mrb[0].mxu0
        %v522 = vadd.f32 %v383, %v521
        %523 = vmatprep.mubr.f32.mxu0 0.0
        %524 = vmatmul.mubr.f32.gmra.mrb[0].mxu0 %v425
        %v525 = vpop.f32.mrb[0].mxu0
        %v526 = vadd.f32 %v388, %v525
        %v527 = vpop.f32.mrb[0].mxu0
        %v528 = vadd.f32 %v388, %v527
        %529 = vmatprep.mubr.f32.mxu0 0.0
        %530 = vmatmul.mubr.f32.gmra.mrb[0].mxu0 %v428
        %v531 = vpop.f32.mrb[0].mxu0
        %v532 = vadd.f32 %v393, %v531
        %v533 = vpop.f32.mrb[0].mxu0
        %v534 = vadd.f32 %v393, %v533
        %535 = vmatprep.mubr.f32.mxu0 0.0
        %536 = vmatmul.mubr.f32.gmra.mrb[0].mxu0 %v431
        %v537 = vpop.f32.mrb[0].mxu0
        %v538 = vadd.f32 %v398, %v537
        %v539 = vpop.f32.mrb[0].mxu0
        %v540 = vadd.f32 %v398, %v539
        %541 = vmatprep.mubr.f32.mxu0 0.0
        %542 = vmatmul.mubr.f32.gmra.mrb[0].mxu0 %v434
        %v543 = vpop.f32.mrb[0].mxu0
        %v544 = vadd.f32 %v403, %v543
        %v545 = vpop.f32.mrb[0].mxu0
        %v546 = vadd.f32 %v403, %v545
        %547 = vmatprep.mubr.f32.mxu0 0.0
        %548 = vmatmul.mubr.f32.gmra.mrb[0].mxu0 %v437
        %v549 = vpop.f32.mrb[0].mxu0
        %v550 = vadd.f32 %v408, %v549
        %v551 = vpop.f32.mrb[0].mxu0
        %v552 = vadd.f32 %v408, %v551
        %553 = vmatprep.mubr.f32.mxu0 0.0
        %554 = vmatmul.mubr.f32.gmra.mrb[0].mxu0 %v440
        %v555 = vpop.f32.mrb[0].mxu0
        %v556 = vadd.f32 %v413, %v555
        %v557 = vpop.f32.mrb[0].mxu0
        %v558 = vadd.f32 %v413, %v557
        %559 = vdwg.mxu0
        %v560 = vmax.f32 %v514, 0.0
        %v561 = vmax.f32 %v516, 0.0
        %v562 = vmax.f32 %v520, 0.0
        %v563 = vmax.f32 %v522, 0.0
        %v564 = vmax.f32 %v526, 0.0
        %v565 = vmax.f32 %v528, 0.0
        %v566 = vmax.f32 %v532, 0.0
        %v567 = vmax.f32 %v534, 0.0
        %v568 = vmax.f32 %v538, 0.0
        %v569 = vmax.f32 %v540, 0.0
        %v570 = vmax.f32 %v544, 0.0
        %v571 = vmax.f32 %v546, 0.0
        %v572 = vmax.f32 %v550, 0.0
        %v573 = vmax.f32 %v552, 0.0
        %v574 = vmax.f32 %v556, 0.0
        %v575 = vmax.f32 %v558, 0.0
        %v576 = vld [vmem:[%s3] sm:$0xff]
        %v577 = vld [vmem:[%s3 + $0x8] sm:$0xff]
        %v578 = vld [vmem:[%s3 + $0x10] sm:$0xff]
        %v579 = vld [vmem:[%s3 + $0x18] sm:$0xff]
        %v580 = vld [vmem:[%s4] sm:$0xff]
        %v581 = vld [vmem:[%s4 + $0x8] sm:$0xff]
        %v582 = vld [vmem:[%s4 + $0x10] sm:$0xff]
        %v583 = vld [vmem:[%s4 + $0x18] sm:$0xff]
        %585 = vset.pattern.permute.xlu0 0
        %586 = vperm.xlu0 %585, %v580
        %v587 = vpop.permute.xlu0 %586
        %590 = vset.pattern.permute.xlu0 0
        %591 = vperm.xlu0 %590, %v581
        %v592 = vpop.permute.xlu0 %591
        %595 = vset.pattern.permute.xlu0 0
        %596 = vperm.xlu0 %595, %v582
        %v597 = vpop.permute.xlu0 %596
        %600 = vset.pattern.permute.xlu0 0
        %601 = vperm.xlu0 %600, %v583
        %v602 = vpop.permute.xlu0 %601
        %vm604 = vcmask 523264
        %v606 = vsel %vm604, %v576, 0
        %v609 = vsel %vm604, %v577, 0
        %v612 = vsel %vm604, %v578, 0
        %v615 = vsel %vm604, %v579, 0
        %617 = vmatprep.subr.mxu0 %v561
        %618 = vmatpush1.msra.mxu0 %v560
        %619 = vmatprep.subr.mxu0 %v563
        %620 = vmatpush1.msra.mxu0 %v562
        %621 = vmatprep.subr.mxu0 %v565
        %622 = vmatpush1.msra.mxu0 %v564
        %623 = vmatprep.subr.mxu0 %v567
        %624 = vmatpush1.msra.mxu0 %v566
        %625 = vmatprep.subr.mxu0 %v569
        %626 = vmatpush1.msra.mxu0 %v568
        %627 = vmatprep.subr.mxu0 %v571
        %628 = vmatpush1.msra.mxu0 %v570
        %629 = vmatprep.subr.mxu0 %v573
        %630 = vmatpush1.msra.mxu0 %v572
        %631 = vmatprep.subr.mxu0 %v575
        %632 = vmatpush1.msra.mxu0 %v574
        %633 = vmatprep.subr.mxu0 0.0
        %634 = vmatpush1.msra.mxu0 0.0
        %635 = vmatprep.subr.mxu0 0.0
        %636 = vmatpush1.msra.mxu0 0.0
        %637 = vmatprep.subr.mxu0 0.0
        %638 = vmatpush1.msra.mxu0 0.0
        %639 = vmatprep.subr.mxu0 0.0
        %640 = vmatpush1.msra.mxu0 0.0
        %641 = vmatprep.subr.mxu0 0.0
        %642 = vmatpush1.msra.mxu0 0.0
        %643 = vmatprep.subr.mxu0 0.0
        %644 = vmatpush1.msra.mxu0 0.0
        %645 = vmatprep.subr.mxu0 0.0
        %646 = vmatpush1.msra.mxu0 0.0
        %647 = vmatprep.subr.mxu0 0.0
        %648 = vmatpush1.msra.mxu0 0.0
        %649 = vmatprep.subr.mxu0 0.0
        %650 = vmatpush1.msra.mxu0 0.0
        %651 = vmatprep.subr.mxu0 0.0
        %652 = vmatpush1.msra.mxu0 0.0
        %653 = vmatprep.subr.mxu0 0.0
        %654 = vmatpush1.msra.mxu0 0.0
        %655 = vmatprep.subr.mxu0 0.0
        %656 = vmatpush1.msra.mxu0 0.0
        %657 = vmatprep.subr.mxu0 0.0
        %658 = vmatpush1.msra.mxu0 0.0
        %659 = vmatprep.subr.mxu0 0.0
        %660 = vmatpush1.msra.mxu0 0.0
        %661 = vmatprep.subr.mxu0 0.0
        %662 = vmatpush1.msra.mxu0 0.0
        %663 = vmatprep.subr.mxu0 0.0
        %664 = vmatpush1.msra.mxu0 0.0
        %665 = vmatprep.subr.mxu0 0.0
        %666 = vmatpush1.msra.mxu0 0.0
        %667 = vmatprep.subr.mxu0 0.0
        %668 = vmatpush1.msra.mxu0 0.0
        %669 = vmatprep.subr.mxu0 0.0
        %670 = vmatpush1.msra.mxu0 0.0
        %671 = vmatprep.subr.mxu0 0.0
        %672 = vmatpush1.msra.mxu0 0.0
        %673 = vmatprep.subr.mxu0 0.0
        %674 = vmatpush1.msra.mxu0 0.0
        %675 = vmatprep.subr.mxu0 0.0
        %676 = vmatpush1.msra.mxu0 0.0
        %677 = vmatprep.subr.mxu0 0.0
        %678 = vmatpush1.msra.mxu0 0.0
        %679 = vmatprep.subr.mxu0 0.0
        %680 = vmatpush1.msra.mxu0 0.0
        %681 = vmatprep.mubr.f32.mxu0 0.0
        %682 = vmatmul.mubr.f32.gmra.mrb[0].mxu0 %v606
        %v683 = vpop.f32.mrb[0].mxu0
        %v684 = vadd.f32 %v587, %v683
        %v685 = vpop.f32.mrb[0].mxu0
        %v686 = vadd.f32 %v587, %v685
        %687 = vmatprep.mubr.f32.mxu0 0.0
        %688 = vmatmul.mubr.f32.gmra.mrb[0].mxu0 %v609
        %v689 = vpop.f32.mrb[0].mxu0
        %v690 = vadd.f32 %v592, %v689
        %v691 = vpop.f32.mrb[0].mxu0
        %v692 = vadd.f32 %v592, %v691
        %693 = vmatprep.mubr.f32.mxu0 0.0
        %694 = vmatmul.mubr.f32.gmra.mrb[0].mxu0 %v612
        %v695 = vpop.f32.mrb[0].mxu0
        %v696 = vadd.f32 %v597, %v695
        %v697 = vpop.f32.mrb[0].mxu0
        %v698 = vadd.f32 %v597, %v697
        %699 = vmatprep.mubr.f32.mxu0 0.0
        %700 = vmatmul.mubr.f32.gmra.mrb[0].mxu0 %v615
        %v701 = vpop.f32.mrb[0].mxu0
        %v702 = vadd.f32 %v602, %v701
        %v703 = vpop.f32.mrb[0].mxu0
        %v704 = vadd.f32 %v602, %v703
        %705 = vdwg.mxu0
        %v706 = vmax.f32 %v684, 0.0
        %v707 = vmax.f32 %v686, 0.0
        %v708 = vmax.f32 %v690, 0.0
        %v709 = vmax.f32 %v692, 0.0
        %v710 = vmax.f32 %v696, 0.0
        %v711 = vmax.f32 %v698, 0.0
        %v712 = vmax.f32 %v702, 0.0
        %v713 = vmax.f32 %v704, 0.0
        %v714 = vld [vmem:[%s5] sm:$0xff]
        %v715 = vld [vmem:[%s5 + $0x8] sm:$0xff]
        %v716 = vld [vmem:[%s6] sm:$0xff]
        %v717 = vld [vmem:[%s6 + $0x8] sm:$0xff]
        %719 = vset.pattern.permute.xlu0 0
        %720 = vperm.xlu0 %719, %v716
        %v721 = vpop.permute.xlu0 %720
        %724 = vset.pattern.permute.xlu0 0
        %725 = vperm.xlu0 %724, %v717
        %v726 = vpop.permute.xlu0 %725
        %vm728 = vcmask 261120
        %v730 = vsel %vm728, %v714, 0
        %v733 = vsel %vm728, %v715, 0
        %735 = vmatprep.subr.mxu0 %v707
        %736 = vmatpush1.msra.mxu0 %v706
        %737 = vmatprep.subr.mxu0 %v709
        %738 = vmatpush1.msra.mxu0 %v708
        %739 = vmatprep.subr.mxu0 %v711
        %740 = vmatpush1.msra.mxu0 %v710
        %741 = vmatprep.subr.mxu0 %v713
        %742 = vmatpush1.msra.mxu0 %v712
        %743 = vmatprep.subr.mxu0 0.0
        %744 = vmatpush1.msra.mxu0 0.0
        %745 = vmatprep.subr.mxu0 0.0
        %746 = vmatpush1.msra.mxu0 0.0
        %747 = vmatprep.subr.mxu0 0.0
        %748 = vmatpush1.msra.mxu0 0.0
        %749 = vmatprep.subr.mxu0 0.0
        %750 = vmatpush1.msra.mxu0 0.0
        %751 = vmatprep.subr.mxu0 0.0
        %752 = vmatpush1.msra.mxu0 0.0
        %753 = vmatprep.subr.mxu0 0.0
        %754 = vmatpush1.msra.mxu0 0.0
        %755 = vmatprep.subr.mxu0 0.0
        %756 = vmatpush1.msra.mxu0 0.0
        %757 = vmatprep.subr.mxu0 0.0
        %758 = vmatpush1.msra.mxu0 0.0
        %759 = vmatprep.subr.mxu0 0.0
        %760 = vmatpush1.msra.mxu0 0.0
        %761 = vmatprep.subr.mxu0 0.0
        %762 = vmatpush1.msra.mxu0 0.0
        %763 = vmatprep.subr.mxu0 0.0
        %764 = vmatpush1.msra.mxu0 0.0
        %765 = vmatprep.subr.mxu0 0.0
        %766 = vmatpush1.msra.mxu0 0.0
        %767 = vmatprep.subr.mxu0 0.0
        %768 = vmatpush1.msra.mxu0 0.0
        %769 = vmatprep.subr.mxu0 0.0
        %770 = vmatpush1.msra.mxu0 0.0
        %771 = vmatprep.subr.mxu0 0.0
        %772 = vmatpush1.msra.mxu0 0.0
        %773 = vmatprep.subr.mxu0 0.0
        %774 = vmatpush1.msra.mxu0 0.0
        %775 = vmatprep.subr.mxu0 0.0
        %776 = vmatpush1.msra.mxu0 0.0
        %777 = vmatprep.subr.mxu0 0.0
        %778 = vmatpush1.msra.mxu0 0.0
        %779 = vmatprep.subr.mxu0 0.0
        %780 = vmatpush1.msra.mxu0 0.0
        %781 = vmatprep.subr.mxu0 0.0
        %782 = vmatpush1.msra.mxu0 0.0
        %783 = vmatprep.subr.mxu0 0.0
        %784 = vmatpush1.msra.mxu0 0.0
        %785 = vmatprep.subr.mxu0 0.0
        %786 = vmatpush1.msra.mxu0 0.0
        %787 = vmatprep.subr.mxu0 0.0
        %788 = vmatpush1.msra.mxu0 0.0
        %789 = vmatprep.subr.mxu0 0.0
        %790 = vmatpush1.msra.mxu0 0.0
        %791 = vmatprep.subr.mxu0 0.0
        %792 = vmatpush1.msra.mxu0 0.0
        %793 = vmatprep.subr.mxu0 0.0
        %794 = vmatpush1.msra.mxu0 0.0
        %795 = vmatprep.subr.mxu0 0.0
        %796 = vmatpush1.msra.mxu0 0.0
        %797 = vmatprep.subr.mxu0 0.0
        %798 = vmatpush1.msra.mxu0 0.0
        %799 = vmatprep.mubr.f32.mxu0 0.0
        %800 = vmatmul.mubr.f32.gmra.mrb[0].mxu0 %v730
        %v801 = vpop.f32.mrb[0].mxu0
        %v802 = vadd.f32 %v721, %v801
        %v803 = vpop.f32.mrb[0].mxu0
        %v804 = vadd.f32 %v721, %v803
        %805 = vmatprep.mubr.f32.mxu0 0.0
        %806 = vmatmul.mubr.f32.gmra.mrb[0].mxu0 %v733
        %v807 = vpop.f32.mrb[0].mxu0
        %v808 = vadd.f32 %v726, %v807
        %v809 = vpop.f32.mrb[0].mxu0
        %v810 = vadd.f32 %v726, %v809
        %811 = vdwg.mxu0
        %v812 = vmax.f32 %v802, 0.0
        %v813 = vmax.f32 %v804, 0.0
        %v814 = vmax.f32 %v808, 0.0
        %v815 = vmax.f32 %v810, 0.0
        %v816 = vld [vmem:[%s7] sm:$0xff]
        %v817 = vld [vmem:[%s7 + $0x8] sm:$0x1]
        %v818 = vld [vmem:[%s8] sm:$0xff]
        %v819 = vld [vmem:[%s8 + $0x8] sm:$0x1]
        %821 = vset.pattern.permute.xlu0 0
        %822 = vperm.xlu0 %821, %v818
        %v823 = vpop.permute.xlu0 %822
        %826 = vset.pattern.permute.xlu0 0
        %827 = vperm.xlu0 %826, %v819
        %v828 = vpop.permute.xlu0 %827
        %vm830 = vcmask 130048
        %v832 = vsel %vm830, %v816, 0
        %v835 = vsel %vm830, %v817, 0
        %837 = vmatprep.subr.mxu0 %v813
        %838 = vmatpush1.msra.mxu0 %v812
        %839 = vmatprep.subr.mxu0 %v815
        %840 = vmatpush1.msra.mxu0 %v814
        %841 = vmatprep.subr.mxu0 0.0
        %842 = vmatpush1.msra.mxu0 0.0
        %843 = vmatprep.subr.mxu0 0.0
        %844 = vmatpush1.msra.mxu0 0.0
        %845 = vmatprep.subr.mxu0 0.0
        %846 = vmatpush1.msra.mxu0 0.0
        %847 = vmatprep.subr.mxu0 0.0
        %848 = vmatpush1.msra.mxu0 0.0
        %849 = vmatprep.subr.mxu0 0.0
        %850 = vmatpush1.msra.mxu0 0.0
        %851 = vmatprep.subr.mxu0 0.0
        %852 = vmatpush1.msra.mxu0 0.0
        %853 = vmatprep.subr.mxu0 0.0
        %854 = vmatpush1.msra.mxu0 0.0
        %855 = vmatprep.subr.mxu0 0.0
        %856 = vmatpush1.msra.mxu0 0.0
        %857 = vmatprep.subr.mxu0 0.0
        %858 = vmatpush1.msra.mxu0 0.0
        %859 = vmatprep.subr.mxu0 0.0
        %860 = vmatpush1.msra.mxu0 0.0
        %861 = vmatprep.subr.mxu0 0.0
        %862 = vmatpush1.msra.mxu0 0.0
        %863 = vmatprep.subr.mxu0 0.0
        %864 = vmatpush1.msra.mxu0 0.0
        %865 = vmatprep.subr.mxu0 0.0
        %866 = vmatpush1.msra.mxu0 0.0
        %867 = vmatprep.subr.mxu0 0.0
        %868 = vmatpush1.msra.mxu0 0.0
        %869 = vmatprep.subr.mxu0 0.0
        %870 = vmatpush1.msra.mxu0 0.0
        %871 = vmatprep.subr.mxu0 0.0
        %872 = vmatpush1.msra.mxu0 0.0
        %873 = vmatprep.subr.mxu0 0.0
        %874 = vmatpush1.msra.mxu0 0.0
        %875 = vmatprep.subr.mxu0 0.0
        %876 = vmatpush1.msra.mxu0 0.0
        %877 = vmatprep.subr.mxu0 0.0
        %878 = vmatpush1.msra.mxu0 0.0
        %879 = vmatprep.subr.mxu0 0.0
        %880 = vmatpush1.msra.mxu0 0.0
        %881 = vmatprep.subr.mxu0 0.0
        %882 = vmatpush1.msra.mxu0 0.0
        %883 = vmatprep.subr.mxu0 0.0
        %884 = vmatpush1.msra.mxu0 0.0
        %885 = vmatprep.subr.mxu0 0.0
        %886 = vmatpush1.msra.mxu0 0.0
        %887 = vmatprep.subr.mxu0 0.0
        %888 = vmatpush1.msra.mxu0 0.0
        %889 = vmatprep.subr.mxu0 0.0
        %890 = vmatpush1.msra.mxu0 0.0
        %891 = vmatprep.subr.mxu0 0.0
        %892 = vmatpush1.msra.mxu0 0.0
        %893 = vmatprep.subr.mxu0 0.0
        %894 = vmatpush1.msra.mxu0 0.0
        %895 = vmatprep.subr.mxu0 0.0
        %896 = vmatpush1.msra.mxu0 0.0
        %897 = vmatprep.subr.mxu0 0.0
        %898 = vmatpush1.msra.mxu0 0.0
        %899 = vmatprep.subr.mxu0 0.0
        %900 = vmatpush1.msra.mxu0 0.0
        %901 = vmatprep.mubr.f32.mxu0 0.0
        %902 = vmatmul.mubr.f32.gmra.mrb[0].mxu0 %v832
        %v903 = vpop.f32.mrb[0].mxu0
        %v904 = vadd.f32 %v823, %v903
        %v905 = vpop.f32.mrb[0].mxu0
        %v906 = vadd.f32 %v823, %v905
        %907 = vmatprep.mubr.f32.mxu0 0.0
        %908 = vmatmul.mubr.f32.gmra.mrb[0].mxu0 %v835
        %v909 = vpop.f32.mrb[0].mxu0
        %v910 = vadd.f32 %v828, %v909
        %v911 = vpop.f32.mrb[0].mxu0
        %v912 = vadd.f32 %v828, %v911
        %913 = vdwg.mxu0
        %vm914 = vcmask 1040384
        %v915 = vsel %vm914, %v910, -inf
        %v916 = vmax.f32 %v904, %v915
        %v917 = vrot.slane %v916, 4
        %v918 = vmax.f32 %v916, %v917
        %v919 = vrot.slane %v918, 2
        %v920 = vmax.f32 %v918, %v919
        %v921 = vrot.slane %v920, 1
        %v922 = vmax.f32 %v920, %v921
        %v923 = vsel %vm914, %v912, -inf
        %v924 = vmax.f32 %v906, %v923
        %v925 = vrot.slane %v924, 4
        %v926 = vmax.f32 %v924, %v925
        %v927 = vrot.slane %v926, 2
        %v928 = vmax.f32 %v926, %v927
        %v929 = vrot.slane %v928, 1
        %v930 = vmax.f32 %v928, %v929
        %v931 = vsub.f32 %v904, %v922
        %v932 = vsub.f32 %v906, %v930
        %v933 = vsub.f32 %v910, %v922
        %v934 = vsub.f32 %v912, %v930
        %v935 = vmul.f32 %v931, 1.442695
        %v936 = vpow.pop %v935
        %v937 = vmul.f32 %v932, 1.442695
        %v938 = vpow.pop %v937
        %v939 = vmul.f32 %v933, 1.442695
        %v940 = vpow.pop %v939
        %v941 = vmul.f32 %v934, 1.442695
        %v942 = vpow.pop %v941
        %v943 = vsel %vm914, %v940, 0.0
        %v944 = vadd.f32 %v936, %v943
        %v945 = vrot.slane %v944, 4
        %v946 = vadd.f32 %v944, %v945
        %v947 = vrot.slane %v946, 2
        %v948 = vadd.f32 %v946, %v947
        %v949 = vrot.slane %v948, 1
        %v950 = vadd.f32 %v948, %v949
        %v951 = vsel %vm914, %v942, 0.0
        %v952 = vadd.f32 %v938, %v951
        %v953 = vrot.slane %v952, 4
        %v954 = vadd.f32 %v952, %v953
        %v955 = vrot.slane %v954, 2
        %v956 = vadd.f32 %v954, %v955
        %v957 = vrot.slane %v956, 1
        %v958 = vadd.f32 %v956, %v957
        %v959 = vrcp.pop %v950
        %v960 = vmul.f32 1.0, %v959
        %v961 = vrcp.pop %v958
        %v962 = vmul.f32 1.0, %v961
        %v963 = vmul.f32 %v936, %v960
        %v964 = vmul.f32 %v938, %v962
        %v965 = vmul.f32 %v940, %v960
        %v966 = vmul.f32 %v942, %v962
        %967 = vst [vmem:[%s338] sm:$0xff] %v963
        %968 = vst [vmem:[%s338 + $0x8] sm:$0xff] %v964
        %969 = vst [vmem:[%s338 + $0x10] sm:$0x1] %v965
        %970 = vst [vmem:[%s338 + $0x18] sm:$0x1] %v966
        %s971 = sand.u32 %s225, 1
        %s972 = scalar_lea.sflag [#allocation3], %s971
        %s973 = sand.u32 %s225, 1
        %s974 = smul.addr %s973, 32
        %s975 = scalar_lea.vmem [#allocation2], %s974
        // Predicated region
        $region57: #{tpu_custom_call.1} parent=55 // pred_check
          %p976 = pneg %p235
        $region58: #{tpu_custom_call.1} parent=55 // pred_check_branch
          %978 = sbr.rel (%p976) target = $region60
        $region59: #{tpu_custom_call.1} parent=55 // pred_region
          %s979 = smul.u32 2, %s23
          %s980 = ssub.s32 3, %s979
          %p981 = scmp.lt.s32.totalorder %s980, 2
          %s982 = scalar_select %p981, %s980, 2
          %s983 = smul.u32 256, %s982
          %s985 = ssub.s32 512, %s983
          %986 = vsyncadd %s972, %s985
          %p987 = scmp.ne.s32.totalorder 0, %s983
          %s988 = smul.addr %s979, 128
          %s989 = scalar_lea.hbm %s9, %s988
          %s990 = smul.u32 %s982, 8
          %s991 = smul.u32 %s990, 2
          %s992 = sshll.u32 %s975, 4
          %s993 = int_to_ptr.vmem [resolvable:$true] %s992
          %s994 = sshll.u32 %s991, 4
          %998 = dma.vmem_to_hbm [thread:$0]  (%p987), %s993, %s994, %s989, %s972, 256, 384, %s990
        $region60: #{tpu_custom_call.1} parent=55 // pred_fallthru
          _
      $region56: #{tpu_custom_call.1} parent=5 // pred_fallthru
        _
      %p999 = scmp.le.s32.totalorder 2, %s18
      // Predicated region
      $region61: #{tpu_custom_call.1} parent=5 // pred_check
        %p1000 = pneg %p999
      $region62: #{tpu_custom_call.1} parent=5 // pred_check_branch
        %1002 = sbr.rel (%p1000) target = $region64
      $region63: #{tpu_custom_call.1} parent=5 // pred_region
        %s1003 = ssub.s32 %s18, 2
        // Predicated region
        $region65: #{tpu_custom_call.1} parent=63 // pred_check
          %p1004 = pneg %p241
        $region66: #{tpu_custom_call.1} parent=63 // pred_check_branch
          %1006 = sbr.rel (%p1004) target = $region68
        $region67: #{tpu_custom_call.1} parent=63 // pred_region
          %s1007 = sand.u32 %s226, 1
          %s1008 = scalar_lea.sflag [#allocation3], %s1007
          %s1009 = sand.u32 %s226, 1
          %s1010 = smul.addr %s1009, 32
          %s1011 = scalar_lea.vmem [#allocation2], %s1010
          %1012 = dma.done %s1008, 512
        $region68: #{tpu_custom_call.1} parent=63 // pred_fallthru
          _
      $region64: #{tpu_custom_call.1} parent=5 // pred_fallthru
        _
    $region6: #{tpu_custom_call.1} parent=1 // loop_footer
      %s22 = sadd.s32 1, %s18
    $region7: #{tpu_custom_call.1} parent=1 // loop_footer_branch
      %17 = sbr.rel target = $region3
    $region8: #{tpu_custom_call.1} parent=1 // loop_exit
      _
    %1013 = vsyncpa [#allocation3], 1
    %s1014 = scalar_lea.sflag [#allocation3], 1
    %1015 = vsyncpa %s1014, 1

</llo_original>
